<compile_context>
chip_gen: v7x
topology: tpu7x:2x2x1
jax: 0.10.0
libtpu: 0.0.40
codegen_flags: <defaults>
</compile_context>

<pallas_src>
import functools

import jax
import jax.numpy as jnp
from jax.experimental import pallas as pl
from jax.experimental.pallas import tpu as pltpu


def _border_kernel(color_ref, x_ref, o_ref, *, C, border, axis):
    """One grid step: write `border | frame-chunk | border` for one (n,c) chunk.

    color_ref : SMEM (C,) int32 — scalar-prefetched per-channel border colour
    x_ref     : VMEM (1, r, c)  — frame chunk
    o_ref     : VMEM (1, R, C_) — output chunk (= frame chunk + 2 borders on `axis`)
    """
    c = pl.program_id(0) % C            # channel of this (n, c) slab (scalar ALU)
    col = color_ref[c]                  # scalar read from SMEM
    x = x_ref[0]                        # (rows, cols)
    bshape = list(x.shape)
    bshape[axis] = border
    b = jnp.full(tuple(bshape), col, dtype=o_ref.dtype)   # VPU splat, no DMA
    # Compose the whole output block in-register (XLU shifts, slack in an
    # HBM-bound kernel) and issue ONE full-block, lane-dense, unmasked store.
    o_ref[0] = jnp.concatenate([b, x, b], axis=axis)


def _round_up(x, m):
    return -(-x // m) * m


def _pick_chunk(total, unit_bytes, budget_bytes, multiple, want_multi=False):
    """Chunk size along the blocked (non-concat) spatial axis.

    The result is either a multiple of `multiple` (dtype-aware sublane pack for
    a second-minor dim, 128 for a lane dim) or the full extent, so the
    BlockSpec always satisfies the TPU tiling rule.  The grid uses pl.cdiv, so
    `total` need not be divisible by the chunk (ragged last block is fine).
    """
    cap = max(1, budget_bytes // max(1, unit_bytes))
    if cap < total:
        chunk = max(multiple, (cap // multiple) * multiple)
    else:
        chunk = total
    if want_multi and chunk >= total and total > multiple:
        # Guarantee >=2 grid steps so both v7x TensorCores get work and the
        # DMA pipeline has something to overlap.
        chunk = _round_up(_round_up(total, 2) // 2, multiple)
        if chunk >= total:
            chunk = multiple
    return min(chunk, total)


def random_border(frames, key, low=0.2, up=0.5, styles=("single",),
                  block_budget_bytes=8 << 20):
    """Pallas implementation of RandomBorder.forward.

    Border geometry and colour are shape-changing / scalar random draws, so
    they are concretized on the host from `key` (this wrapper cannot run under
    jax.jit — same restriction as the original data-loader op).
    Returns (out, (bh, bw), colour) so callers/tests can rebuild a reference.
    """
    N, C, H, W = frames.shape
    k_rate, k_style, k_mode, k_scalar, k_chan = jax.random.split(key, 5)

    b_rate = low + float(jax.random.uniform(k_rate, ())) * (up - low)
    if W < H:
        bh = H
        bw = int(W * H * b_rate / ((2.0 - 2.0 * b_rate) * bh))
    else:
        bw = W
        bh = int(W * H * b_rate / ((2.0 - 2.0 * b_rate) * bw))

    style = styles[int(jax.random.randint(k_style, (), 0, len(styles)))]
    assert style == "single", "only the 'single' border style is supported"
    # TODO(synk): 'image'/'blur_image' styles require border JPEGs from disk
    # (PIL decode, Resize, GaussianBlur) and have no self-contained equivalent.

    # 'single' colour.  The range asymmetry (0..255 vs 0..254) is intentional:
    # the torch source uses random.randint(0, 255) (inclusive) for the shared
    # grey and torch.randint(high=255) (exclusive) for the per-channel draw.
    if float(jax.random.uniform(k_mode, ())) < 0.8:
        color_i32 = jnp.full((C,), int(jax.random.randint(k_scalar, (), 0, 256)),
                             dtype=jnp.int32)
    else:
        color_i32 = jax.random.randint(k_chan, (C,), 0, 255).astype(jnp.int32)
    color = color_i32.astype(frames.dtype)

    left_right = (bh == H)   # faithful to `if bh == h: cat(dim=3) else cat(dim=2)`
    if (left_right and bw == 0) or (not left_right and bh == 0):
        return frames, (bh, bw), color   # concat with empty borders is a no-op

    itemsize = jnp.dtype(frames.dtype).itemsize
    sub_mult = {4: 8, 2: 16, 1: 32}.get(itemsize, 8)   # dtype-aware sublane pack
    x3 = frames.reshape(N * C, H, W)                   # contiguous reshape: free
    want_multi = (N * C) == 1

    if left_right:
        # Borders on left/right: concat axis is W (lanes); chunk along H.
        H_out, W_out = H, W + 2 * bw
        blk_h = _pick_chunk(H, (W + W_out) * itemsize, block_budget_bytes,
                            sub_mult, want_multi)
        grid = (N * C, pl.cdiv(H, blk_h))
        in_spec = pl.BlockSpec((1, blk_h, W), lambda nc, j, color: (nc, j, 0))
        out_spec = pl.BlockSpec((1, blk_h, W_out), lambda nc, j, color: (nc, j, 0))
        blk_bytes = blk_h * (W + W_out) * itemsize
        kernel = functools.partial(_border_kernel, C=C, border=bw, axis=1)
    else:
        # Borders on top/bottom: concat axis is H (sublanes); chunk along W
        # (lanes) so VMEM stays bounded regardless of H.
        H_out, W_out = H + 2 * bh, W
        blk_w = _pick_chunk(W, (H + H_out) * itemsize, block_budget_bytes,
                            128, want_multi)
        grid = (N * C, pl.cdiv(W, blk_w))
        in_spec = pl.BlockSpec((1, H, blk_w), lambda nc, j, color: (nc, 0, j))
        out_spec = pl.BlockSpec((1, H_out, blk_w), lambda nc, j, color: (nc, 0, j))
        blk_bytes = blk_w * (H + H_out) * itemsize
        kernel = functools.partial(_border_kernel, C=C, border=bh, axis=0)

    # Double-buffered in+out blocks + scalar prefetch + internal scratch headroom.
    vmem_limit = int(min(max(2 * blk_bytes + (2 << 20), 16 << 20), 48 << 20))

    out3 = pl.pallas_call(
        kernel,
        out_shape=jax.ShapeDtypeStruct((N * C, H_out, W_out), frames.dtype),
        grid_spec=pltpu.PrefetchScalarGridSpec(
            num_scalar_prefetch=1,
            grid=grid,
            in_specs=[in_spec],
            out_specs=out_spec),
        compiler_params=pltpu.CompilerParams(
            dimension_semantics=("parallel", "parallel"),
            vmem_limit_bytes=vmem_limit),
        cost_estimate=pl.CostEstimate(
            flops=0, transcendentals=0,
            bytes_accessed=int(N * C * (H * W + H_out * W_out) * itemsize + C * 4)),
    )(color_i32, x3)

    return out3.reshape(N, C, H_out, W_out), (bh, bw), color


def _reference(frames, bh, bw, color):
    """Pure-jnp reference with the exact torch semantics."""
    N, C, H, W = frames.shape
    border = jnp.broadcast_to(color.reshape(1, C, 1, 1),
                              (N, C, bh, bw)).astype(frames.dtype)
    if bh == H:
        return jnp.concatenate([border, frames, border], axis=3)
    return jnp.concatenate([border, frames, border], axis=2)


if __name__ == "__main__":
    root = jax.random.PRNGKey(0)
    k_d1, k_a1, k_d2, k_a2, k_d3, k_a3 = jax.random.split(root, 6)

    # Case 1: W >= H  -> borders added on top & bottom (sublane concat).
    f1 = jax.random.normal(k_d1, (2, 3, 16, 24), dtype=jnp.float32) * 127.0
    o1, (bh1, bw1), c1 = random_border(f1, k_a1)
    o1 = jax.block_until_ready(o1)
    r1 = _reference(f1, bh1, bw1, c1)
    assert o1.shape == r1.shape and o1.dtype == r1.dtype, (o1.shape, r1.shape)
    assert bool(jnp.allclose(o1, r1)), "mismatch vs reference (top/bottom case)"

    # Case 2: W < H  -> borders added on left & right (lane concat).
    f2 = jax.random.normal(k_d2, (2, 3, 24, 16), dtype=jnp.float32) * 127.0
    o2, (bh2, bw2), c2 = random_border(f2, k_a2)
    o2 = jax.block_until_ready(o2)
    r2 = _reference(f2, bh2, bw2, c2)
    assert o2.shape == r2.shape and o2.dtype == r2.dtype, (o2.shape, r2.shape)
    assert bool(jnp.allclose(o2, r2)), "mismatch vs reference (left/right case)"

    # Case 3: tiny VMEM budget forces multi-chunk grid with a ragged last block.
    f3 = jax.random.normal(k_d3, (2, 3, 20, 16), dtype=jnp.float32) * 127.0
    o3, (bh3, bw3), c3 = random_border(f3, k_a3, block_budget_bytes=1024)
    o3 = jax.block_until_ready(o3)
    r3 = _reference(f3, bh3, bw3, c3)
    assert o3.shape == r3.shape and o3.dtype == r3.dtype, (o3.shape, r3.shape)
    assert bool(jnp.allclose(o3, r3)), "mismatch vs reference (ragged-chunk case)"

    print("KERNEL_OK")
</pallas_src>

<mosaic_0001>
module attributes {stable_mosaic.version = 11 : i64} {
  func.func @_border_kernel(%arg0: i32, %arg1: i32, %arg2: memref<3xi32, #tpu.memory_space<smem>>, %arg3: memref<1x16x24xf32, #tpu.memory_space<vmem>>, %arg4: memref<1x24x24xf32, #tpu.memory_space<vmem>>) attributes {dimension_semantics = [#tpu.dimension_semantics<parallel>, #tpu.dimension_semantics<parallel>], iteration_bounds = array<i64: 6, 1>, scalar_prefetch = 1 : i64, scratch_operands = 0 : i64, tpu.core_type = #tpu.core_type<tc>, window_params = [{transform_indices = @transform_0, window_bounds = array<i64: 1, 16, 24>}, {transform_indices = @transform_1, window_bounds = array<i64: 1, 24, 24>}]} {
    %c3_i32 = arith.constant 3 : i32
    %c0_i32 = arith.constant 0 : i32
    %0 = arith.cmpi eq, %c3_i32, %c0_i32 : i32
    %c1_i32 = arith.constant 1 : i32
    %1 = arith.select %0, %c1_i32, %c3_i32 : i32
    %2 = arith.remsi %arg0, %1 : i32
    %c0_i32_0 = arith.constant 0 : i32
    %3 = arith.cmpi ne, %2, %c0_i32_0 : i32
    %c0_i32_1 = arith.constant 0 : i32
    %4 = arith.cmpi slt, %2, %c0_i32_1 : i32
    %c0_i32_2 = arith.constant 0 : i32
    %5 = arith.cmpi slt, %1, %c0_i32_2 : i32
    %6 = arith.xori %4, %5 : i1
    %7 = arith.andi %6, %3 : i1
    %8 = arith.addi %2, %1 : i32
    %9 = arith.select %7, %8, %2 : i32
    %10 = arith.index_cast %9 : i32 to index
    %11 = memref.load %arg2[%10] : memref<3xi32, #tpu.memory_space<smem>>
    %c0 = arith.constant 0 : index
    %c0_3 = arith.constant 0 : index
    %c0_4 = arith.constant 0 : index
    %12 = vector.load %arg3[%c0, %c0_3, %c0_4] : memref<1x16x24xf32, #tpu.memory_space<vmem>>, vector<1x16x24xf32>
    %13 = vector.shape_cast %12 : vector<1x16x24xf32> to vector<16x24xf32>
    %14 = arith.sitofp %11 : i32 to f32
    %15 = vector.broadcast %14 : f32 to vector<4x24xf32>
    %16 = tpu.concatenate %15, %13, %15 in 0 : vector<4x24xf32>, vector<16x24xf32>, vector<4x24xf32> -> vector<24x24xf32>
    %c0_5 = arith.constant 0 : index
    %c0_6 = arith.constant 0 : index
    %c0_7 = arith.constant 0 : index
    %17 = vector.load %arg4[%c0_5, %c0_6, %c0_7] : memref<1x24x24xf32, #tpu.memory_space<vmem>>, vector<1x24x24xf32>
    %18 = vector.shape_cast %17 : vector<1x24x24xf32> to vector<24x24xf32>
    %19 = vector.shape_cast %16 : vector<24x24xf32> to vector<1x24x24xf32>
    tpu.vector_store %arg4[%c0_5, %c0_6, %c0_7], %19 {strides = array<i32>} : memref<1x24x24xf32, #tpu.memory_space<vmem>>, vector<1x24x24xf32>,
    return
  }
  func.func @transform_0(%arg0: i32, %arg1: i32, %arg2: memref<3xi32, #tpu.memory_space<smem>>) -> (i32, i32, i32) {
    %c0_i32 = arith.constant 0 : i32
    %c0_i32_0 = arith.constant 0 : i32
    return %arg0, %c0_i32, %arg1 : i32, i32, i32
  }
  func.func @transform_1(%arg0: i32, %arg1: i32, %arg2: memref<3xi32, #tpu.memory_space<smem>>) -> (i32, i32, i32) {
    %c0_i32 = arith.constant 0 : i32
    %c0_i32_0 = arith.constant 0 : i32
    return %arg0, %c0_i32, %arg1 : i32, i32, i32
  }
}

</mosaic_0001>

<llo_original>
// kernel: tpu_custom_call.1
$region0: #{tpu_custom_call.1}
  #allocation0 [shape = 'u32[]', space=smem, size = 0x4, offset = 0x4, fixed_abs, tag = 'smem constant byte address 0x4 - core index']
  #allocation1 [shape = 'u32[144,128]{1,0:T(1,128)}', space=vmem, size = 0x12000, scoped, tag = 'internal scratch']
  #allocation2 [shape = 's32[1]{0}', space=sflag, size = 0x4, scoped, tag = 'scoped memory for tpu_custom_call.1']
  #allocation3 [shape = 'u8[512]{0}', space=smem, size = 0x200, scoped, tag = 'prefetched SMEM operand 0']
  %s0 = inlined_call_operand.hbm [shape: s32[3], index: 0, kind: input, shape index: {}]
  %s1 = inlined_call_operand.hbm [shape: f32[6,16,24], index: 1, kind: input, shape index: {}]
  %s2 = inlined_call_operand.hbm [shape: f32[6,24,24], index: 2, kind: output, shape index: {}]
  %s3 = sld [smem:[#allocation0]]
  $region41: #{tpu_custom_call.1} parent=0
    _
  %s5 = ssub.s32 1, %s3
  %s6 = scalar_select 0, %s5, %s3
  %8 = dma.hbm_to_smem %s0, 16, [#allocation3], [#allocation2]
  %9 = dma.done [#allocation2], 16
  %10 = sfence
  $region1: #{tpu_custom_call.1} parent=0
    #allocation4 [shape = 'u8[16384]{0}', space=vmem, size = 0x4000, scoped, tag = 'input window, operand 1']
    #allocation5 [shape = 's32[2]{0}', space=sflag, size = 0x8, scoped, tag = 'scoped memory for tpu_custom_call.1']
    #allocation6 [shape = 's32[2]{0}', space=sflag, size = 0x8, scoped, tag = 'scoped memory for tpu_custom_call.1']
    #allocation7 [shape = 'u8[24576]{0}', space=vmem, size = 0x6000, scoped, tag = 'output window, operand 0']
    %11 = vsyncpa [#allocation5], 0
    %s12 = scalar_lea.sflag [#allocation5], 1
    %13 = vsyncpa %s12, 0
    %14 = vsyncpa [#allocation6], 0
    %s15 = scalar_lea.sflag [#allocation6], 1
    %16 = vsyncpa %s15, 0
    loop: start=0, step=1, limit=8
    $region2: #{tpu_custom_call.1} parent=1 // loop_pre_header
      _
    $region3: #{tpu_custom_call.1} parent=1 // loop_header
      %s18 = sphi 0, %s22
      %p19 = scmp.ge.s32.totalorder %s18, 8
      %s25 = sphi 0, %s37
      %s26 = sphi 0, %s33
      %s27 = sphi 0, %s25
      %s28 = sphi 0, %s26
      %s29 = sphi 0, %s27
      %s30 = sphi 0, %s28
      %s42 = sphi 0, %s44
      %s45 = sphi 0, %s42
      %s46 = sphi 0, %s45
      %s62 = sphi 0, %s46
      %s70 = sphi 0, %s72
      %s73 = sphi 0, %s70
      %s74 = sphi 0, %s73
      %s90 = sphi 0, %s74
    $region4: #{tpu_custom_call.1} parent=1 // loop_header_branch
      %21 = sbr.rel (%p19) target = $region8
    $region5: #{tpu_custom_call.1} parent=1 // loop_body
      %s23 = ssub.s32 %s18, 1
      %s24 = ssub.s32 %s18, 2
      %s31 = sadd.s32 1, %s26
      %p32 = scmp.ge.s32.totalorder %s31, 1
      %s33 = scalar_select %p32, 0, %s31
      %s34 = sadd.s32 1, %s25
      %s35 = scalar_select %p32, %s34, %s25
      %p36 = scmp.ge.s32.totalorder %s35, 6
      %s37 = scalar_select %p36, 0, %s35
      %s38 = ssub.s32 %s25, %s37
      %s39 = ssub.s32 %s26, %s33
      %s40 = sor.u32 %s38, %s39
      %p41 = scmp.eq.s32.totalorder %s40, 0
      %s43 = sadd.s32 %s42, 1
      %s44 = scalar_select %p41, %s42, %s43
      %p47 = pneg %p41
      %p48 = scmp.eq.s32.totalorder %s18, 5
      %p49 = por %p47, %p48
      %p50 = scmp.ne.s32.totalorder %s42, %s45
      %p51 = scmp.eq.s32.totalorder %s18, 0
      %p52 = por %p50, %p51
      %p53 = scmp.ne.s32.totalorder %s42, %s45
      %p54 = scmp.eq.s32.totalorder %s23, 5
      %p55 = por %p53, %p54
      %p56 = scmp.ne.s32.totalorder %s45, %s46
      %p57 = scmp.eq.s32.totalorder %s23, 0
      %p58 = por %p56, %p57
      %p59 = scmp.ne.s32.totalorder %s45, %s46
      %p60 = scmp.eq.s32.totalorder %s24, 5
      %p61 = por %p59, %p60
      %p63 = scmp.ne.s32.totalorder %s46, %s62
      %p64 = scmp.eq.s32.totalorder %s24, 0
      %p65 = por %p63, %p64
      %s66 = ssub.s32 %s25, %s37
      %s67 = ssub.s32 %s26, %s33
      %s68 = sor.u32 %s66, %s67
      %p69 = scmp.eq.s32.totalorder %s68, 0
      %s71 = sadd.s32 %s70, 1
      %s72 = scalar_select %p69, %s70, %s71
      %p75 = pneg %p69
      %p76 = scmp.eq.s32.totalorder %s18, 5
      %p77 = por %p75, %p76
      %p78 = scmp.ne.s32.totalorder %s70, %s73
      %p79 = scmp.eq.s32.totalorder %s18, 0
      %p80 = por %p78, %p79
      %p81 = scmp.ne.s32.totalorder %s70, %s73
      %p82 = scmp.eq.s32.totalorder %s23, 5
      %p83 = por %p81, %p82
      %p84 = scmp.ne.s32.totalorder %s73, %s74
      %p85 = scmp.eq.s32.totalorder %s23, 0
      %p86 = por %p84, %p85
      %p87 = scmp.ne.s32.totalorder %s73, %s74
      %p88 = scmp.eq.s32.totalorder %s24, 5
      %p89 = por %p87, %p88
      %p91 = scmp.ne.s32.totalorder %s74, %s90
      %p92 = scmp.eq.s32.totalorder %s24, 0
      %p93 = por %p91, %p92
      %p94 = scmp.le.s32.totalorder 1, %s18
      %p95 = scmp.lt.s32.totalorder %s18, 7
      %p96 = pnand %p94, %p95
      %p97 = pneg %p96
      // Predicated region
      $region9: #{tpu_custom_call.1} parent=5 // pred_check
        _
      $region10: #{tpu_custom_call.1} parent=5 // pred_check_branch
        %99 = sbr.rel (%p96) target = $region12
      $region11: #{tpu_custom_call.1} parent=5 // pred_region
        %s100 = ssub.s32 %s18, 1
      $region12: #{tpu_custom_call.1} parent=5 // pred_fallthru
        _
      %p101 = scmp.lt.s32.totalorder %s18, 6
      // Predicated region
      $region13: #{tpu_custom_call.1} parent=5 // pred_check
        %p102 = pneg %p101
      $region14: #{tpu_custom_call.1} parent=5 // pred_check_branch
        %104 = sbr.rel (%p102) target = $region16
      $region15: #{tpu_custom_call.1} parent=5 // pred_region
        // Predicated region
        $region17: #{tpu_custom_call.1} parent=15 // pred_check
          %p105 = pneg %p52
        $region18: #{tpu_custom_call.1} parent=15 // pred_check_branch
          %107 = sbr.rel (%p105) target = $region20
        $region19: #{tpu_custom_call.1} parent=15 // pred_region
          %s108 = sand.u32 %s42, 1
          %s109 = scalar_lea.sflag [#allocation5], %s108
          %s110 = sand.u32 %s42, 1
          %s111 = smul.addr %s110, 16
          %s112 = scalar_lea.vmem [#allocation4], %s111
          %s114 = ssub.s32 256, 256
          %115 = vsyncadd %s109, %s114
          %s116 = smul.addr %s25, 2
          %s117 = sadd.s32 %s26, %s116
          %s118 = smul.addr %s117, 128
          %s119 = scalar_lea.hbm %s1, %s118
          %s120 = sshll.u32 %s112, 4
          %s121 = int_to_ptr.vmem [resolvable:$true] %s120
          %126 = dma.hbm_to_vmem [thread:$0]  %s119, 256, %s121, %s109, 128, 128, 8
        $region20: #{tpu_custom_call.1} parent=15 // pred_fallthru
          _
      $region16: #{tpu_custom_call.1} parent=5 // pred_fallthru
        _
      %p127 = scmp.le.s32.totalorder 1, %s18
      %p128 = scmp.lt.s32.totalorder %s18, 7
      %p129 = pnand %p127, %p128
      %p130 = pneg %p129
      // Predicated region
      $region21: #{tpu_custom_call.1} parent=5 // pred_check
        _
      $region22: #{tpu_custom_call.1} parent=5 // pred_check_branch
        %132 = sbr.rel (%p129) target = $region24
      $region23: #{tpu_custom_call.1} parent=5 // pred_region
        %s133 = ssub.s32 %s18, 1
        %s134 = sand.u32 %s45, 1
        %s135 = scalar_lea.sflag [#allocation5], %s134
        %s136 = sand.u32 %s45, 1
        %s137 = smul.addr %s136, 16
        %s138 = scalar_lea.vmem [#allocation4], %s137
        // Predicated region
        $region25: #{tpu_custom_call.1} parent=23 // pred_check
          %p139 = pneg %p58
        $region26: #{tpu_custom_call.1} parent=23 // pred_check_branch
          %141 = sbr.rel (%p139) target = $region28
        $region27: #{tpu_custom_call.1} parent=23 // pred_region
          %142 = dma.done %s135, 256
        $region28: #{tpu_custom_call.1} parent=23 // pred_fallthru
          _
        %s143 = sand.u32 %s45, 1
        %s144 = scalar_lea.sflag [#allocation5], %s143
        %s145 = sand.u32 %s45, 1
        %s146 = smul.addr %s145, 16
        %s147 = scalar_lea.vmem [#allocation4], %s146
        %p148 = pneg %p58
        %p149 = pneg %p55
        %p150 = pneg %p86
        %p151 = pneg %p83
        %s152 = sand.u32 %s73, 1
        %s153 = scalar_lea.sflag [#allocation6], %s152
        %s154 = sand.u32 %s73, 1
        %s155 = smul.addr %s154, 24
        %s156 = scalar_lea.vmem [#allocation7], %s155
        %p157 = scmp.lt.s32.totalorder %s27, 0
        %s158 = ssub.s32 0, %s27
        %s159 = scalar_select %p157, %s158, %s27
        %s160 = sdiv.u32.pop %s159, 3
        %s161 = srem.u32.pop %s159, 3
        %s162 = ssub.s32 0, %s161
        %s163 = scalar_select %p157, %s162, %s161
        %p164 = scmp.ne.s32.totalorder %s163, 0
        %p165 = scmp.lt.s32.totalorder %s163, 0
        %p166 = pnand %p165, %p164
        %p167 = pneg %p166
        %s168 = sadd.s32 %s163, 3
        %s169 = scalar_select %p167, %s168, %s163
        %s170 = sld [smem:[#allocation3 + %s169]]
        %v171 = vld [vmem:[%s138] sm:$0xff]
        %v172 = vld [vmem:[%s138 + $0x8] sm:$0xff]
        %s173 = scvt.s32.f32 %s170
        %v174 = vstv %s173
        %vm177 = vcmask 1043456
        %v178 = vrot.slane %v171, 4
        %v179 = vrot.slane %v172, 4
        %v180 = vsel %vm177, %v178, %v179
        %v184 = vsel %vm177, %v174, %v178
        %v185 = vsel %vm177, %v179, %v174
        %vm186 = vcmask 195584
        %187 = vst.msk [vmem:[%s156] sm:$0xff] %vm186, %v184
        %188 = vst.msk [vmem:[%s156 + $0x8] sm:$0xff] %vm186, %v180
        %189 = vst.msk [vmem:[%s156 + $0x10] sm:$0xff] %vm186, %v185
        %s190 = sand.u32 %s73, 1
        %s191 = scalar_lea.sflag [#allocation6], %s190
        %s192 = sand.u32 %s73, 1
        %s193 = smul.addr %s192, 24
        %s194 = scalar_lea.vmem [#allocation7], %s193
        // Predicated region
        $region29: #{tpu_custom_call.1} parent=23 // pred_check
          %p195 = pneg %p83
        $region30: #{tpu_custom_call.1} parent=23 // pred_check_branch
          %197 = sbr.rel (%p195) target = $region32
        $region31: #{tpu_custom_call.1} parent=23 // pred_region
          %s199 = ssub.s32 384, 384
          %200 = vsyncadd %s191, %s199
          %s201 = smul.addr %s27, 3
          %s202 = sadd.s32 %s28, %s201
          %s203 = smul.addr %s202, 128
          %s204 = scalar_lea.hbm %s2, %s203
          %s205 = sshll.u32 %s194, 4
          %s206 = int_to_ptr.vmem [resolvable:$true] %s205
          %211 = dma.vmem_to_hbm [thread:$0]  %s206, 384, %s204, %s191, 128, 128, 8
        $region32: #{tpu_custom_call.1} parent=23 // pred_fallthru
          _
      $region24: #{tpu_custom_call.1} parent=5 // pred_fallthru
        _
      %p212 = scmp.le.s32.totalorder 2, %s18
      // Predicated region
      $region33: #{tpu_custom_call.1} parent=5 // pred_check
        %p213 = pneg %p212
      $region34: #{tpu_custom_call.1} parent=5 // pred_check_branch
        %215 = sbr.rel (%p213) target = $region36
      $region35: #{tpu_custom_call.1} parent=5 // pred_region
        %s216 = ssub.s32 %s18, 2
        // Predicated region
        $region37: #{tpu_custom_call.1} parent=35 // pred_check
          %p217 = pneg %p89
        $region38: #{tpu_custom_call.1} parent=35 // pred_check_branch
          %219 = sbr.rel (%p217) target = $region40
        $region39: #{tpu_custom_call.1} parent=35 // pred_region
          %s220 = sand.u32 %s74, 1
          %s221 = scalar_lea.sflag [#allocation6], %s220
          %s222 = sand.u32 %s74, 1
          %s223 = smul.addr %s222, 24
          %s224 = scalar_lea.vmem [#allocation7], %s223
          %225 = dma.done %s221, 384
        $region40: #{tpu_custom_call.1} parent=35 // pred_fallthru
          _
      $region36: #{tpu_custom_call.1} parent=5 // pred_fallthru
        _
    $region6: #{tpu_custom_call.1} parent=1 // loop_footer
      %s22 = sadd.s32 1, %s18
    $region7: #{tpu_custom_call.1} parent=1 // loop_footer_branch
      %17 = sbr.rel target = $region3
    $region8: #{tpu_custom_call.1} parent=1 // loop_exit
      _
    %226 = vsyncpa [#allocation5], 1
    %s227 = scalar_lea.sflag [#allocation5], 1
    %228 = vsyncpa %s227, 1
    %229 = vsyncpa [#allocation6], 1
    %s230 = scalar_lea.sflag [#allocation6], 1
    %231 = vsyncpa %s230, 1

</llo_original>
